<compile_context>
chip_gen: v7x
topology: tpu7x:2x2x1
jax: 0.10.0
libtpu: 0.0.40
codegen_flags: <defaults>
</compile_context>

<pallas_src>
import functools
import math

import jax
import jax.numpy as jnp
from jax.experimental import pallas as pl
from jax.experimental.pallas import tpu as pltpu


# ---------------------------------------------------------------------------
# Fully fused two-layer GCN (small-graph fast path, everything VMEM-resident).
# ---------------------------------------------------------------------------
def _fused_gcn2_kernel(a_ref, x_ref, w1_ref, b1_ref, w2_ref, b2_ref, o_ref):
    a = a_ref[...]
    # Layer 1: relu( (A @ X) @ W1 + b1 )
    ax = jnp.dot(a, x_ref[...], preferred_element_type=jnp.float32)
    h = jnp.dot(ax.astype(w1_ref.dtype), w1_ref[...],
                preferred_element_type=jnp.float32) + b1_ref[...]
    h = jnp.maximum(h, 0.0)
    # Layer 2: (A @ H) @ W2 + b2
    ah = jnp.dot(a, h.astype(a.dtype), preferred_element_type=jnp.float32)
    out = jnp.dot(ah.astype(w2_ref.dtype), w2_ref[...],
                  preferred_element_type=jnp.float32) + b2_ref[...]
    o_ref[...] = out.astype(o_ref.dtype)


def _fused_gcn2(a, x, w1, b1, w2, b2, *, out_dtype):
    n_pad = a.shape[0]
    cin_p = x.shape[1]
    hid_p = w1.shape[1]
    cout_p = w2.shape[1]
    return pl.pallas_call(
        _fused_gcn2_kernel,
        out_shape=jax.ShapeDtypeStruct((n_pad, cout_p), out_dtype),
        grid_spec=pltpu.PrefetchScalarGridSpec(
            num_scalar_prefetch=0,
            grid=(1,),
            in_specs=[
                pl.BlockSpec((n_pad, n_pad), lambda i: (0, 0)),   # A
                pl.BlockSpec((n_pad, cin_p), lambda i: (0, 0)),   # X
                pl.BlockSpec((cin_p, hid_p), lambda i: (0, 0)),   # W1
                pl.BlockSpec((1, hid_p), lambda i: (0, 0)),       # b1
                pl.BlockSpec((hid_p, cout_p), lambda i: (0, 0)),  # W2
                pl.BlockSpec((1, cout_p), lambda i: (0, 0)),      # b2
            ],
            out_specs=pl.BlockSpec((n_pad, cout_p), lambda i: (0, 0)),
        ),
        compiler_params=pltpu.CompilerParams(
            dimension_semantics=("arbitrary",),
        ),
    )(a, x, w1, b1, w2, b2)


# ---------------------------------------------------------------------------
# Tiled single-layer GCN (scales past VMEM; used for large graphs).
# ---------------------------------------------------------------------------
def _gcn_layer_kernel(a_ref, x_ref, w_ref, b_ref, o_ref, acc_ref, *, apply_relu):
    """One GCN layer:  out = relu?( (sum_k A[i,k] @ X[k]) @ W + b )."""
    k = pl.program_id(1)

    @pl.when(k == 0)
    def _():
        acc_ref[...] = jnp.zeros_like(acc_ref)

    # N^2-cost contraction, done at the (narrower) input-channel width.
    acc_ref[...] += jnp.dot(
        a_ref[...], x_ref[...], preferred_element_type=jnp.float32
    )

    @pl.when(k == pl.num_programs(1) - 1)
    def _():
        # Weight matmul + bias + activation once per row tile (last k only).
        h = jnp.dot(
            acc_ref[...].astype(w_ref.dtype),
            w_ref[...],
            preferred_element_type=jnp.float32,
        ) + b_ref[...]
        if apply_relu:
            h = jnp.maximum(h, 0.0)
        o_ref[...] = h.astype(o_ref.dtype)


def _gcn_layer(a, x, w, b, *, relu, out_dtype, tile_rows, tile_cols):
    n_pad = a.shape[0]
    cin_p = x.shape[1]
    cout_p = w.shape[1]
    grid = (n_pad // tile_rows, n_pad // tile_cols)

    return pl.pallas_call(
        functools.partial(_gcn_layer_kernel, apply_relu=relu),
        out_shape=jax.ShapeDtypeStruct((n_pad, cout_p), out_dtype),
        grid_spec=pltpu.PrefetchScalarGridSpec(
            num_scalar_prefetch=0,
            grid=grid,
            in_specs=[
                pl.BlockSpec((tile_rows, tile_cols), lambda i, k: (i, k)),  # A tile
                pl.BlockSpec((tile_cols, cin_p), lambda i, k: (k, 0)),      # X rows
                pl.BlockSpec((cin_p, cout_p), lambda i, k: (0, 0)),         # W (resident)
                pl.BlockSpec((1, cout_p), lambda i, k: (0, 0)),             # b (resident)
            ],
            out_specs=pl.BlockSpec((tile_rows, cout_p), lambda i, k: (i, 0)),
            scratch_shapes=[pltpu.VMEM((tile_rows, cin_p), jnp.float32)],
        ),
        compiler_params=pltpu.CompilerParams(
            dimension_semantics=("parallel", "arbitrary"),
        ),
    )(a, x, w, b)


# ---------------------------------------------------------------------------
# Wrapper: padding, path selection.
# ---------------------------------------------------------------------------
def _round_up(v, m):
    return ((v + m - 1) // m) * m


def _pad2(x, rows, cols):
    return jnp.pad(x, ((0, rows - x.shape[0]), (0, cols - x.shape[1])))


def simple_gcn_forward(a_hat, x, w1, b1, w2, b2, *,
                       matmul_dtype=jnp.float32,
                       tile_rows=128, tile_cols=128,
                       force_tiled=False):
    """out = Ahat @ relu(Ahat @ x @ W1 + b1) @ W2 + b2, lane-dense padded."""
    n, cin = x.shape
    hid = w1.shape[1]
    cout = w2.shape[1]

    n_pad = _round_up(n, math.lcm(tile_rows, tile_cols))
    cin_p = _round_up(cin, 128)
    hid_p = _round_up(hid, 128)
    cout_p = _round_up(cout, 128)

    # Zero padding is exact: padded A rows/cols and padded weight rows/cols
    # are zero, so padded lanes never contaminate real outputs.
    a_p = _pad2(a_hat, n_pad, n_pad).astype(matmul_dtype)
    x_p = _pad2(x, n_pad, cin_p).astype(matmul_dtype)
    w1_p = _pad2(w1, cin_p, hid_p).astype(matmul_dtype)
    w2_p = _pad2(w2, hid_p, cout_p).astype(matmul_dtype)
    b1_p = _pad2(b1.reshape(1, -1), 1, hid_p).astype(jnp.float32)
    b2_p = _pad2(b2.reshape(1, -1), 1, cout_p).astype(jnp.float32)

    itemsize = jnp.dtype(matmul_dtype).itemsize
    fused_bytes = itemsize * (
        n_pad * n_pad + n_pad * cin_p + cin_p * hid_p + hid_p * cout_p
        + n_pad * hid_p + n_pad * cout_p
    ) + 4 * n_pad * cout_p

    if (not force_tiled) and fused_bytes <= 12 * 1024 * 1024:
        out_p = _fused_gcn2(a_p, x_p, w1_p, b1_p, w2_p, b2_p,
                            out_dtype=jnp.float32)
    else:
        h = _gcn_layer(a_p, x_p, w1_p, b1_p, relu=True, out_dtype=matmul_dtype,
                       tile_rows=tile_rows, tile_cols=tile_cols)
        out_p = _gcn_layer(a_p, h, w2_p, b2_p, relu=False, out_dtype=jnp.float32,
                           tile_rows=tile_rows, tile_cols=tile_cols)
    return out_p[:n, :cout]


def build_normalized_adj(edge_index, num_nodes):
    """Dense Ahat = D^{-1/2} (A + I) D^{-1/2}; self-loops only where missing (PyG gcn_norm)."""
    a = jnp.zeros((num_nodes, num_nodes), dtype=jnp.float32)
    src, dst = edge_index
    a = a.at[src, dst].set(1.0)
    a = a.at[dst, src].set(1.0)                         # undirected graph
    diag = jnp.diagonal(a)
    a = a + jnp.diag(jnp.where(diag > 0.0, 0.0, 1.0))   # add_remaining_self_loops
    deg = jnp.sum(a, axis=1)
    d_inv_sqrt = jnp.where(deg > 0, 1.0 / jnp.sqrt(deg), 0.0)
    return a * d_inv_sqrt[:, None] * d_inv_sqrt[None, :]


if __name__ == "__main__":
    key = jax.random.PRNGKey(0)

    # Shapes consistent with the module: node_emb_dim = 16, hidden = 32.
    # Batch 8 independent 16-node ring graphs block-diagonally -> 128 nodes,
    # so the node axis fills (8,128) tiles and the MXU.
    num_graphs = 8
    nodes_per_graph = 16
    num_nodes = num_graphs * nodes_per_graph          # 128
    in_channels = 16                                  # node-type embedding dim
    hidden_channels = 32
    out_channels = 16

    nodes = jnp.arange(num_nodes, dtype=jnp.int32)
    graph_id = nodes // nodes_per_graph
    local = nodes % nodes_per_graph
    src = nodes
    dst = graph_id * nodes_per_graph + (local + 1) % nodes_per_graph
    edge_index = jnp.stack([src, dst], axis=0)        # [2, E] block-diagonal rings

    # TODO(synk): graph construction / gcn_norm (scatter into dense Ahat) is
    # host-side preprocessing in plain JAX, not a Pallas kernel, at these sizes.
    a_hat = build_normalized_adj(edge_index, num_nodes)

    k_x, k_w1, k_b1, k_w2, k_b2 = jax.random.split(key, 5)
    x = jax.random.normal(k_x, (num_nodes, in_channels), dtype=jnp.float32)
    w1 = jax.random.normal(k_w1, (in_channels, hidden_channels), dtype=jnp.float32) * (
        1.0 / jnp.sqrt(in_channels)
    )
    b1 = 0.1 * jax.random.normal(k_b1, (hidden_channels,), dtype=jnp.float32)
    w2 = jax.random.normal(k_w2, (hidden_channels, out_channels), dtype=jnp.float32) * (
        1.0 / jnp.sqrt(hidden_channels)
    )
    b2 = 0.1 * jax.random.normal(k_b2, (out_channels,), dtype=jnp.float32)

    # Pure-JAX reference (same math, outside Pallas).
    h_ref = jnp.maximum(a_hat @ (x @ w1) + b1, 0.0)
    out_ref = a_hat @ (h_ref @ w2) + b2

    # Fused single-kernel f32 path (default at this size): tight check.
    out_fused = jax.block_until_ready(
        simple_gcn_forward(a_hat, x, w1, b1, w2, b2, matmul_dtype=jnp.float32)
    )
    assert out_fused.shape == (num_nodes, out_channels)
    assert jnp.allclose(out_fused, out_ref, atol=1e-4, rtol=1e-4)

    # Tiled per-layer path (the large-graph path), forced here for coverage.
    out_tiled = jax.block_until_ready(
        simple_gcn_forward(a_hat, x, w1, b1, w2, b2, matmul_dtype=jnp.float32,
                           force_tiled=True)
    )
    assert out_tiled.shape == (num_nodes, out_channels)
    assert jnp.allclose(out_tiled, out_ref, atol=1e-4, rtol=1e-4)

    # bf16 MXU feeds with f32 accumulation (recommended at scale).
    out_bf16 = jax.block_until_ready(
        simple_gcn_forward(a_hat, x, w1, b1, w2, b2, matmul_dtype=jnp.bfloat16)
    )
    assert out_bf16.shape == (num_nodes, out_channels)
    assert jnp.allclose(out_bf16, out_ref, atol=1e-1, rtol=1e-1)

    print("KERNEL_OK")
</pallas_src>

<mosaic_0001>
module attributes {stable_mosaic.version = 11 : i64} {
  func.func @_fused_gcn2_kernel(%arg0: i32, %arg1: memref<128x128xf32, #tpu.memory_space<vmem>>, %arg2: memref<128x128xf32, #tpu.memory_space<vmem>>, %arg3: memref<128x128xf32, #tpu.memory_space<vmem>>, %arg4: memref<1x128xf32, #tpu.memory_space<vmem>>, %arg5: memref<128x128xf32, #tpu.memory_space<vmem>>, %arg6: memref<1x128xf32, #tpu.memory_space<vmem>>, %arg7: memref<128x128xf32, #tpu.memory_space<vmem>>) attributes {dimension_semantics = [#tpu.dimension_semantics<arbitrary>], iteration_bounds = array<i64: 1>, scalar_prefetch = 0 : i64, scratch_operands = 0 : i64, tpu.core_type = #tpu.core_type<tc>, window_params = [{pipeline_mode = #tpu.pipeline_mode<synchronous>, transform_indices = @transform_0, window_bounds = array<i64: 128, 128>}, {pipeline_mode = #tpu.pipeline_mode<synchronous>, transform_indices = @transform_1, window_bounds = array<i64: 128, 128>}, {pipeline_mode = #tpu.pipeline_mode<synchronous>, transform_indices = @transform_2, window_bounds = array<i64: 128, 128>}, {pipeline_mode = #tpu.pipeline_mode<synchronous>, transform_indices = @transform_3, window_bounds = array<i64: 1, 128>}, {pipeline_mode = #tpu.pipeline_mode<synchronous>, transform_indices = @transform_4, window_bounds = array<i64: 128, 128>}, {pipeline_mode = #tpu.pipeline_mode<synchronous>, transform_indices = @transform_5, window_bounds = array<i64: 1, 128>}, {pipeline_mode = #tpu.pipeline_mode<synchronous>, transform_indices = @transform_6, window_bounds = array<i64: 128, 128>}]} {
    %c0 = arith.constant 0 : index
    %c0_0 = arith.constant 0 : index
    %0 = vector.load %arg1[%c0, %c0_0] : memref<128x128xf32, #tpu.memory_space<vmem>>, vector<128x128xf32>
    %c0_1 = arith.constant 0 : index
    %c0_2 = arith.constant 0 : index
    %1 = vector.load %arg2[%c0_1, %c0_2] : memref<128x128xf32, #tpu.memory_space<vmem>>, vector<128x128xf32>
    %cst = arith.constant dense<0.000000e+00> : vector<128x128xf32>
    %2 = tpu.matmul %0, %1, %cst {dimension_numbers = #tpu.dot_dimension_numbers<[1], [0], [0], [1], [0, 0, 1, 1], [], []>} : vector<128x128xf32>, vector<128x128xf32>, vector<128x128xf32> -> vector<128x128xf32>
    %c0_3 = arith.constant 0 : index
    %c0_4 = arith.constant 0 : index
    %3 = vector.load %arg3[%c0_3, %c0_4] : memref<128x128xf32, #tpu.memory_space<vmem>>, vector<128x128xf32>
    %cst_5 = arith.constant dense<0.000000e+00> : vector<128x128xf32>
    %4 = tpu.matmul %2, %3, %cst_5 {dimension_numbers = #tpu.dot_dimension_numbers<[1], [0], [0], [1], [0, 0, 1, 1], [], []>} : vector<128x128xf32>, vector<128x128xf32>, vector<128x128xf32> -> vector<128x128xf32>
    %c0_6 = arith.constant 0 : index
    %c0_7 = arith.constant 0 : index
    %5 = vector.load %arg4[%c0_6, %c0_7] : memref<1x128xf32, #tpu.memory_space<vmem>>, vector<1x128xf32>
    %6 = vector.broadcast %5 : vector<1x128xf32> to vector<128x128xf32>
    %7 = arith.addf %4, %6 : vector<128x128xf32>
    %cst_8 = arith.constant 0.000000e+00 : f32
    %8 = vector.broadcast %cst_8 : f32 to vector<128x128xf32>
    %9 = arith.maximumf %7, %8 : vector<128x128xf32>
    %cst_9 = arith.constant dense<0.000000e+00> : vector<128x128xf32>
    %10 = tpu.matmul %0, %9, %cst_9 {dimension_numbers = #tpu.dot_dimension_numbers<[1], [0], [0], [1], [0, 0, 1, 1], [], []>} : vector<128x128xf32>, vector<128x128xf32>, vector<128x128xf32> -> vector<128x128xf32>
    %c0_10 = arith.constant 0 : index
    %c0_11 = arith.constant 0 : index
    %11 = vector.load %arg5[%c0_10, %c0_11] : memref<128x128xf32, #tpu.memory_space<vmem>>, vector<128x128xf32>
    %cst_12 = arith.constant dense<0.000000e+00> : vector<128x128xf32>
    %12 = tpu.matmul %10, %11, %cst_12 {dimension_numbers = #tpu.dot_dimension_numbers<[1], [0], [0], [1], [0, 0, 1, 1], [], []>} : vector<128x128xf32>, vector<128x128xf32>, vector<128x128xf32> -> vector<128x128xf32>
    %c0_13 = arith.constant 0 : index
    %c0_14 = arith.constant 0 : index
    %13 = vector.load %arg6[%c0_13, %c0_14] : memref<1x128xf32, #tpu.memory_space<vmem>>, vector<1x128xf32>
    %14 = vector.broadcast %13 : vector<1x128xf32> to vector<128x128xf32>
    %15 = arith.addf %12, %14 : vector<128x128xf32>
    %c0_15 = arith.constant 0 : index
    %c0_16 = arith.constant 0 : index
    %16 = vector.load %arg7[%c0_15, %c0_16] : memref<128x128xf32, #tpu.memory_space<vmem>>, vector<128x128xf32>
    tpu.vector_store %arg7[%c0_15, %c0_16], %15 {strides = array<i32>} : memref<128x128xf32, #tpu.memory_space<vmem>>, vector<128x128xf32>,
    return
  }
  func.func @transform_0(%arg0: i32) -> (i32, i32) {
    %c0_i32 = arith.constant 0 : i32
    %c0_i32_0 = arith.constant 0 : i32
    %c0_i32_1 = arith.constant 0 : i32
    return %c0_i32, %c0_i32_0 : i32, i32
  }
  func.func @transform_1(%arg0: i32) -> (i32, i32) {
    %c0_i32 = arith.constant 0 : i32
    %c0_i32_0 = arith.constant 0 : i32
    %c0_i32_1 = arith.constant 0 : i32
    return %c0_i32, %c0_i32_0 : i32, i32
  }
  func.func @transform_2(%arg0: i32) -> (i32, i32) {
    %c0_i32 = arith.constant 0 : i32
    %c0_i32_0 = arith.constant 0 : i32
    %c0_i32_1 = arith.constant 0 : i32
    return %c0_i32, %c0_i32_0 : i32, i32
  }
  func.func @transform_3(%arg0: i32) -> (i32, i32) {
    %c0_i32 = arith.constant 0 : i32
    %c0_i32_0 = arith.constant 0 : i32
    %c0_i32_1 = arith.constant 0 : i32
    return %c0_i32, %c0_i32_0 : i32, i32
  }
  func.func @transform_4(%arg0: i32) -> (i32, i32) {
    %c0_i32 = arith.constant 0 : i32
    %c0_i32_0 = arith.constant 0 : i32
    %c0_i32_1 = arith.constant 0 : i32
    return %c0_i32, %c0_i32_0 : i32, i32
  }
  func.func @transform_5(%arg0: i32) -> (i32, i32) {
    %c0_i32 = arith.constant 0 : i32
    %c0_i32_0 = arith.constant 0 : i32
    %c0_i32_1 = arith.constant 0 : i32
    return %c0_i32, %c0_i32_0 : i32, i32
  }
  func.func @transform_6(%arg0: i32) -> (i32, i32) {
    %c0_i32 = arith.constant 0 : i32
    %c0_i32_0 = arith.constant 0 : i32
    %c0_i32_1 = arith.constant 0 : i32
    return %c0_i32, %c0_i32_0 : i32, i32
  }
}

</mosaic_0001>

<llo_original>
// kernel: tpu_custom_call.1
$region0: #{tpu_custom_call.1}
  #allocation0 [shape = 'u32[]', space=smem, size = 0x4, offset = 0x4, fixed_abs, tag = 'smem constant byte address 0x4 - core index']
  #allocation1 [shape = 'u32[144,128]{1,0:T(1,128)}', space=vmem, size = 0x12000, scoped, tag = 'internal scratch']
  %s0 = inlined_call_operand.hbm [shape: f32[128,128], index: 0, kind: input, shape index: {}]
  %s1 = inlined_call_operand.hbm [shape: f32[128,128], index: 1, kind: input, shape index: {}]
  %s2 = inlined_call_operand.hbm [shape: f32[128,128], index: 2, kind: input, shape index: {}]
  %s3 = inlined_call_operand.vmem [shape: f32[1,128], index: 3, kind: input, shape index: {}]
  %s4 = inlined_call_operand.hbm [shape: f32[128,128], index: 4, kind: input, shape index: {}]
  %s5 = inlined_call_operand.vmem [shape: f32[1,128], index: 5, kind: input, shape index: {}]
  %s6 = inlined_call_operand.hbm [shape: f32[128,128], index: 6, kind: output, shape index: {}]
  %s7 = sld [smem:[#allocation0]]
  $region50: #{tpu_custom_call.1} parent=0
    _
  %s9 = ssub.s32 1, %s7
  %s10 = scalar_select 0, %s9, %s7
  $region1: #{tpu_custom_call.1} parent=0
    #allocation2 [shape = 'u8[65536]{0}', space=vmem, size = 0x10000, scoped, tag = 'input window, operand 0, single buffered']
    #allocation3 [shape = 's32[1]{0}', space=sflag, size = 0x4, scoped, tag = 'scoped memory for tpu_custom_call.1']
    #allocation4 [shape = 's32[1]{0}', space=sflag, size = 0x4, scoped, tag = 'scoped memory for tpu_custom_call.1']
    #allocation5 [shape = 'u8[65536]{0}', space=vmem, size = 0x10000, scoped, tag = 'input window, operand 1, single buffered']
    #allocation6 [shape = 's32[1]{0}', space=sflag, size = 0x4, scoped, tag = 'scoped memory for tpu_custom_call.1']
    #allocation7 [shape = 'u8[65536]{0}', space=vmem, size = 0x10000, scoped, tag = 'input window, operand 2, single buffered']
    #allocation8 [shape = 'u8[65536]{0}', space=vmem, size = 0x10000, scoped, tag = 'input window, operand 4, single buffered']
    #allocation9 [shape = 's32[1]{0}', space=sflag, size = 0x4, scoped, tag = 'scoped memory for tpu_custom_call.1']
    #allocation10 [shape = 'u8[65536]{0}', space=vmem, size = 0x10000, scoped, tag = 'output window, operand 0, single buffered']
    %11 = vsyncpa [#allocation3], 0
    %12 = vsyncpa [#allocation6], 0
    %13 = vsyncpa [#allocation9], 0
    %14 = vsyncpa [#allocation4], 0
    // Predicated region
    $region2: #{tpu_custom_call.1} parent=1 // pred_check
      _
    $region3: #{tpu_custom_call.1} parent=1 // pred_check_branch
      %16 = sbr.rel (0) target = $region5
    $region4: #{tpu_custom_call.1} parent=1 // pred_region
      %s18 = ssub.s32 2048, 2048
      %19 = vsyncadd [#allocation3], %s18
      %s20 = sshll.u32 [#allocation2], 4
      %s21 = int_to_ptr.vmem [resolvable:$true] %s20
      %26 = dma.hbm_to_vmem [thread:$0]  %s0, 2048, %s21, [#allocation3], 128, 128, 8
    $region5: #{tpu_custom_call.1} parent=1 // pred_fallthru
      _
    // Predicated region
    $region6: #{tpu_custom_call.1} parent=1 // pred_check
      _
    $region7: #{tpu_custom_call.1} parent=1 // pred_check_branch
      %28 = sbr.rel (0) target = $region9
    $region8: #{tpu_custom_call.1} parent=1 // pred_region
      %s30 = ssub.s32 2048, 2048
      %31 = vsyncadd [#allocation6], %s30
      %s32 = sshll.u32 [#allocation5], 4
      %s33 = int_to_ptr.vmem [resolvable:$true] %s32
      %38 = dma.hbm_to_vmem [thread:$0]  %s1, 2048, %s33, [#allocation6], 128, 128, 8
    $region9: #{tpu_custom_call.1} parent=1 // pred_fallthru
      _
    // Predicated region
    $region10: #{tpu_custom_call.1} parent=1 // pred_check
      _
    $region11: #{tpu_custom_call.1} parent=1 // pred_check_branch
      %40 = sbr.rel (0) target = $region13
    $region12: #{tpu_custom_call.1} parent=1 // pred_region
      %s42 = ssub.s32 2048, 2048
      %43 = vsyncadd [#allocation6], %s42
      %s44 = sshll.u32 [#allocation7], 4
      %s45 = int_to_ptr.vmem [resolvable:$true] %s44
      %50 = dma.hbm_to_vmem [thread:$0]  %s2, 2048, %s45, [#allocation6], 128, 128, 8
    $region13: #{tpu_custom_call.1} parent=1 // pred_fallthru
      _
    // Predicated region
    $region14: #{tpu_custom_call.1} parent=1 // pred_check
      _
    $region15: #{tpu_custom_call.1} parent=1 // pred_check_branch
      %52 = sbr.rel (0) target = $region17
    $region16: #{tpu_custom_call.1} parent=1 // pred_region
      _
    $region17: #{tpu_custom_call.1} parent=1 // pred_fallthru
      _
    // Predicated region
    $region18: #{tpu_custom_call.1} parent=1 // pred_check
      _
    $region19: #{tpu_custom_call.1} parent=1 // pred_check_branch
      %54 = sbr.rel (0) target = $region21
    $region20: #{tpu_custom_call.1} parent=1 // pred_region
      %s56 = ssub.s32 2048, 2048
      %57 = vsyncadd [#allocation9], %s56
      %s58 = sshll.u32 [#allocation8], 4
      %s59 = int_to_ptr.vmem [resolvable:$true] %s58
      %64 = dma.hbm_to_vmem [thread:$0]  %s4, 2048, %s59, [#allocation9], 128, 128, 8
    $region21: #{tpu_custom_call.1} parent=1 // pred_fallthru
      _
    // Predicated region
    $region22: #{tpu_custom_call.1} parent=1 // pred_check
      _
    $region23: #{tpu_custom_call.1} parent=1 // pred_check_branch
      %66 = sbr.rel (0) target = $region25
    $region24: #{tpu_custom_call.1} parent=1 // pred_region
      _
    $region25: #{tpu_custom_call.1} parent=1 // pred_fallthru
      _
    // Predicated region
    $region26: #{tpu_custom_call.1} parent=1 // pred_check
      _
    $region27: #{tpu_custom_call.1} parent=1 // pred_check_branch
      %68 = sbr.rel (0) target = $region29
    $region28: #{tpu_custom_call.1} parent=1 // pred_region
      %69 = dma.done [#allocation3], 2048
    $region29: #{tpu_custom_call.1} parent=1 // pred_fallthru
      _
    // Predicated region
    $region30: #{tpu_custom_call.1} parent=1 // pred_check
      _
    $region31: #{tpu_custom_call.1} parent=1 // pred_check_branch
      %71 = sbr.rel (0) target = $region33
    $region32: #{tpu_custom_call.1} parent=1 // pred_region
      %72 = dma.done [#allocation6], 2048
    $region33: #{tpu_custom_call.1} parent=1 // pred_fallthru
      _
    // Predicated region
    $region34: #{tpu_custom_call.1} parent=1 // pred_check
      _
    $region35: #{tpu_custom_call.1} parent=1 // pred_check_branch
      %74 = sbr.rel (0) target = $region37
    $region36: #{tpu_custom_call.1} parent=1 // pred_region
      %75 = dma.done [#allocation6], 2048
    $region37: #{tpu_custom_call.1} parent=1 // pred_fallthru
      _
    // Predicated region
    $region38: #{tpu_custom_call.1} parent=1 // pred_check
      _
    $region39: #{tpu_custom_call.1} parent=1 // pred_check_branch
      %77 = sbr.rel (0) target = $region41
    $region40: #{tpu_custom_call.1} parent=1 // pred_region
      %78 = dma.done [#allocation9], 2048
    $region41: #{tpu_custom_call.1} parent=1 // pred_fallthru
      _
    %v79 = vld [vmem:[#allocation2] sm:$0xff]
    %v80 = vld [vmem:[#allocation2 + $0x8] sm:$0xff]
    %v81 = vld [vmem:[#allocation2 + $0x10] sm:$0xff]
    %v82 = vld [vmem:[#allocation2 + $0x18] sm:$0xff]
    %v83 = vld [vmem:[#allocation2 + $0x20] sm:$0xff]
    %v84 = vld [vmem:[#allocation2 + $0x28] sm:$0xff]
    %v85 = vld [vmem:[#allocation2 + $0x30] sm:$0xff]
    %v86 = vld [vmem:[#allocation2 + $0x38] sm:$0xff]
    %v87 = vld [vmem:[#allocation2 + $0x40] sm:$0xff]
    %v88 = vld [vmem:[#allocation2 + $0x48] sm:$0xff]
    %v89 = vld [vmem:[#allocation2 + $0x50] sm:$0xff]
    %v90 = vld [vmem:[#allocation2 + $0x58] sm:$0xff]
    %v91 = vld [vmem:[#allocation2 + $0x60] sm:$0xff]
    %v92 = vld [vmem:[#allocation2 + $0x68] sm:$0xff]
    %v93 = vld [vmem:[#allocation2 + $0x70] sm:$0xff]
    %v94 = vld [vmem:[#allocation2 + $0x78] sm:$0xff]
    %v95 = vld [vmem:[#allocation5] sm:$0xff]
    %v96 = vld [vmem:[#allocation5 + $0x8] sm:$0xff]
    %v97 = vld [vmem:[#allocation5 + $0x10] sm:$0xff]
    %v98 = vld [vmem:[#allocation5 + $0x18] sm:$0xff]
    %v99 = vld [vmem:[#allocation5 + $0x20] sm:$0xff]
    %v100 = vld [vmem:[#allocation5 + $0x28] sm:$0xff]
    %v101 = vld [vmem:[#allocation5 + $0x30] sm:$0xff]
    %v102 = vld [vmem:[#allocation5 + $0x38] sm:$0xff]
    %v103 = vld [vmem:[#allocation5 + $0x40] sm:$0xff]
    %v104 = vld [vmem:[#allocation5 + $0x48] sm:$0xff]
    %v105 = vld [vmem:[#allocation5 + $0x50] sm:$0xff]
    %v106 = vld [vmem:[#allocation5 + $0x58] sm:$0xff]
    %v107 = vld [vmem:[#allocation5 + $0x60] sm:$0xff]
    %v108 = vld [vmem:[#allocation5 + $0x68] sm:$0xff]
    %v109 = vld [vmem:[#allocation5 + $0x70] sm:$0xff]
    %v110 = vld [vmem:[#allocation5 + $0x78] sm:$0xff]
    %111 = vmatprep.subr.mxu0 0.0
    %112 = vmatpush1.msra.mxu0 %v95
    %113 = vmatprep.subr.mxu0 0.0
    %114 = vmatpush1.msra.mxu0 %v96
    %115 = vmatprep.subr.mxu0 0.0
    %116 = vmatpush1.msra.mxu0 %v97
    %117 = vmatprep.subr.mxu0 0.0
    %118 = vmatpush1.msra.mxu0 %v98
    %119 = vmatprep.subr.mxu0 0.0
    %120 = vmatpush1.msra.mxu0 %v99
    %121 = vmatprep.subr.mxu0 0.0
    %122 = vmatpush1.msra.mxu0 %v100
    %123 = vmatprep.subr.mxu0 0.0
    %124 = vmatpush1.msra.mxu0 %v101
    %125 = vmatprep.subr.mxu0 0.0
    %126 = vmatpush1.msra.mxu0 %v102
    %127 = vmatprep.subr.mxu0 0.0
    %128 = vmatpush1.msra.mxu0 %v103
    %129 = vmatprep.subr.mxu0 0.0
    %130 = vmatpush1.msra.mxu0 %v104
    %131 = vmatprep.subr.mxu0 0.0
    %132 = vmatpush1.msra.mxu0 %v105
    %133 = vmatprep.subr.mxu0 0.0
    %134 = vmatpush1.msra.mxu0 %v106
    %135 = vmatprep.subr.mxu0 0.0
    %136 = vmatpush1.msra.mxu0 %v107
    %137 = vmatprep.subr.mxu0 0.0
    %138 = vmatpush1.msra.mxu0 %v108
    %139 = vmatprep.subr.mxu0 0.0
    %140 = vmatpush1.msra.mxu0 %v109
    %141 = vmatprep.subr.mxu0 0.0
    %142 = vmatpush1.msra.mxu0 %v110
    %143 = vmatprep.subr.mxu0 0.0
    %144 = vmatpush1.msra.mxu0 0.0
    %145 = vmatprep.subr.mxu0 0.0
    %146 = vmatpush1.msra.mxu0 0.0
    %147 = vmatprep.subr.mxu0 0.0
    %148 = vmatpush1.msra.mxu0 0.0
    %149 = vmatprep.subr.mxu0 0.0
    %150 = vmatpush1.msra.mxu0 0.0
    %151 = vmatprep.subr.mxu0 0.0
    %152 = vmatpush1.msra.mxu0 0.0
    %153 = vmatprep.subr.mxu0 0.0
    %154 = vmatpush1.msra.mxu0 0.0
    %155 = vmatprep.subr.mxu0 0.0
    %156 = vmatpush1.msra.mxu0 0.0
    %157 = vmatprep.subr.mxu0 0.0
    %158 = vmatpush1.msra.mxu0 0.0
    %159 = vmatprep.subr.mxu0 0.0
    %160 = vmatpush1.msra.mxu0 0.0
    %161 = vmatprep.subr.mxu0 0.0
    %162 = vmatpush1.msra.mxu0 0.0
    %163 = vmatprep.subr.mxu0 0.0
    %164 = vmatpush1.msra.mxu0 0.0
    %165 = vmatprep.subr.mxu0 0.0
    %166 = vmatpush1.msra.mxu0 0.0
    %167 = vmatprep.subr.mxu0 0.0
    %168 = vmatpush1.msra.mxu0 0.0
    %169 = vmatprep.subr.mxu0 0.0
    %170 = vmatpush1.msra.mxu0 0.0
    %171 = vmatprep.subr.mxu0 0.0
    %172 = vmatpush1.msra.mxu0 0.0
    %173 = vmatprep.subr.mxu0 0.0
    %174 = vmatpush1.msra.mxu0 0.0
    %175 = vmatprep.mubr.f32.mxu0 0.0
    %176 = vmatmul.mubr.f32.gmra.mrb[0].mxu0 %v79
    %v177 = vpop.f32.mrb[0].mxu0
    %v178 = vadd.f32 0.0, %v177
    %v179 = vpop.f32.mrb[0].mxu0
    %180 = vmatprep.mubr.f32.mxu0 0.0
    %181 = vmatmul.mubr.f32.gmra.mrb[0].mxu0 %v80
    %v182 = vpop.f32.mrb[0].mxu0
    %v183 = vadd.f32 0.0, %v182
    %v184 = vpop.f32.mrb[0].mxu0
    %185 = vmatprep.mubr.f32.mxu0 0.0
    %186 = vmatmul.mubr.f32.gmra.mrb[0].mxu0 %v81
    %v187 = vpop.f32.mrb[0].mxu0
    %v188 = vadd.f32 0.0, %v187
    %v189 = vpop.f32.mrb[0].mxu0
    %190 = vmatprep.mubr.f32.mxu0 0.0
    %191 = vmatmul.mubr.f32.gmra.mrb[0].mxu0 %v82
    %v192 = vpop.f32.mrb[0].mxu0
    %v193 = vadd.f32 0.0, %v192
    %v194 = vpop.f32.mrb[0].mxu0
    %195 = vmatprep.mubr.f32.mxu0 0.0
    %196 = vmatmul.mubr.f32.gmra.mrb[0].mxu0 %v83
    %v197 = vpop.f32.mrb[0].mxu0
    %v198 = vadd.f32 0.0, %v197
    %v199 = vpop.f32.mrb[0].mxu0
    %200 = vmatprep.mubr.f32.mxu0 0.0
    %201 = vmatmul.mubr.f32.gmra.mrb[0].mxu0 %v84
    %v202 = vpop.f32.mrb[0].mxu0
    %v203 = vadd.f32 0.0, %v202
    %v204 = vpop.f32.mrb[0].mxu0
    %205 = vmatprep.mubr.f32.mxu0 0.0
    %206 = vmatmul.mubr.f32.gmra.mrb[0].mxu0 %v85
    %v207 = vpop.f32.mrb[0].mxu0
    %v208 = vadd.f32 0.0, %v207
    %v209 = vpop.f32.mrb[0].mxu0
    %210 = vmatprep.mubr.f32.mxu0 0.0
    %211 = vmatmul.mubr.f32.gmra.mrb[0].mxu0 %v86
    %v212 = vpop.f32.mrb[0].mxu0
    %v213 = vadd.f32 0.0, %v212
    %v214 = vpop.f32.mrb[0].mxu0
    %215 = vmatprep.mubr.f32.mxu0 0.0
    %216 = vmatmul.mubr.f32.gmra.mrb[0].mxu0 %v87
    %v217 = vpop.f32.mrb[0].mxu0
    %v218 = vadd.f32 0.0, %v217
    %v219 = vpop.f32.mrb[0].mxu0
    %220 = vmatprep.mubr.f32.mxu0 0.0
    %221 = vmatmul.mubr.f32.gmra.mrb[0].mxu0 %v88
    %v222 = vpop.f32.mrb[0].mxu0
    %v223 = vadd.f32 0.0, %v222
    %v224 = vpop.f32.mrb[0].mxu0
    %225 = vmatprep.mubr.f32.mxu0 0.0
    %226 = vmatmul.mubr.f32.gmra.mrb[0].mxu0 %v89
    %v227 = vpop.f32.mrb[0].mxu0
    %v228 = vadd.f32 0.0, %v227
    %v229 = vpop.f32.mrb[0].mxu0
    %230 = vmatprep.mubr.f32.mxu0 0.0
    %231 = vmatmul.mubr.f32.gmra.mrb[0].mxu0 %v90
    %v232 = vpop.f32.mrb[0].mxu0
    %v233 = vadd.f32 0.0, %v232
    %v234 = vpop.f32.mrb[0].mxu0
    %235 = vmatprep.mubr.f32.mxu0 0.0
    %236 = vmatmul.mubr.f32.gmra.mrb[0].mxu0 %v91
    %v237 = vpop.f32.mrb[0].mxu0
    %v238 = vadd.f32 0.0, %v237
    %v239 = vpop.f32.mrb[0].mxu0
    %240 = vmatprep.mubr.f32.mxu0 0.0
    %241 = vmatmul.mubr.f32.gmra.mrb[0].mxu0 %v92
    %v242 = vpop.f32.mrb[0].mxu0
    %v243 = vadd.f32 0.0, %v242
    %v244 = vpop.f32.mrb[0].mxu0
    %245 = vmatprep.mubr.f32.mxu0 0.0
    %246 = vmatmul.mubr.f32.gmra.mrb[0].mxu0 %v93
    %v247 = vpop.f32.mrb[0].mxu0
    %v248 = vadd.f32 0.0, %v247
    %v249 = vpop.f32.mrb[0].mxu0
    %250 = vmatprep.mubr.f32.mxu0 0.0
    %251 = vmatmul.mubr.f32.gmra.mrb[0].mxu0 %v94
    %v252 = vpop.f32.mrb[0].mxu0
    %v253 = vadd.f32 0.0, %v252
    %v254 = vpop.f32.mrb[0].mxu0
    %255 = vdwg.mxu0
    %v256 = vld [vmem:[#allocation7] sm:$0xff]
    %v257 = vld [vmem:[#allocation7 + $0x8] sm:$0xff]
    %v258 = vld [vmem:[#allocation7 + $0x10] sm:$0xff]
    %v259 = vld [vmem:[#allocation7 + $0x18] sm:$0xff]
    %v260 = vld [vmem:[#allocation7 + $0x20] sm:$0xff]
    %v261 = vld [vmem:[#allocation7 + $0x28] sm:$0xff]
    %v262 = vld [vmem:[#allocation7 + $0x30] sm:$0xff]
    %v263 = vld [vmem:[#allocation7 + $0x38] sm:$0xff]
    %v264 = vld [vmem:[#allocation7 + $0x40] sm:$0xff]
    %v265 = vld [vmem:[#allocation7 + $0x48] sm:$0xff]
    %v266 = vld [vmem:[#allocation7 + $0x50] sm:$0xff]
    %v267 = vld [vmem:[#allocation7 + $0x58] sm:$0xff]
    %v268 = vld [vmem:[#allocation7 + $0x60] sm:$0xff]
    %v269 = vld [vmem:[#allocation7 + $0x68] sm:$0xff]
    %v270 = vld [vmem:[#allocation7 + $0x70] sm:$0xff]
    %v271 = vld [vmem:[#allocation7 + $0x78] sm:$0xff]
    %v272 = vld [vmem:[%s3] sm:$0x1]
    %v274 = vlaneseq
    %v275 = vshrl.u32 %v274, 7
    %v276 = vsub.s32 0, %v275
    %v277 = vrot.slane %v272, %v276
    %279 = vmatprep.subr.mxu0 0.0
    %280 = vmatpush1.msra.mxu0 %v256
    %281 = vmatprep.subr.mxu0 0.0
    %282 = vmatpush1.msra.mxu0 %v257
    %283 = vmatprep.subr.mxu0 0.0
    %284 = vmatpush1.msra.mxu0 %v258
    %285 = vmatprep.subr.mxu0 0.0
    %286 = vmatpush1.msra.mxu0 %v259
    %287 = vmatprep.subr.mxu0 0.0
    %288 = vmatpush1.msra.mxu0 %v260
    %289 = vmatprep.subr.mxu0 0.0
    %290 = vmatpush1.msra.mxu0 %v261
    %291 = vmatprep.subr.mxu0 0.0
    %292 = vmatpush1.msra.mxu0 %v262
    %293 = vmatprep.subr.mxu0 0.0
    %294 = vmatpush1.msra.mxu0 %v263
    %295 = vmatprep.subr.mxu0 0.0
    %296 = vmatpush1.msra.mxu0 %v264
    %297 = vmatprep.subr.mxu0 0.0
    %298 = vmatpush1.msra.mxu0 %v265
    %299 = vmatprep.subr.mxu0 0.0
    %300 = vmatpush1.msra.mxu0 %v266
    %301 = vmatprep.subr.mxu0 0.0
    %302 = vmatpush1.msra.mxu0 %v267
    %303 = vmatprep.subr.mxu0 0.0
    %304 = vmatpush1.msra.mxu0 %v268
    %305 = vmatprep.subr.mxu0 0.0
    %306 = vmatpush1.msra.mxu0 %v269
    %307 = vmatprep.subr.mxu0 0.0
    %308 = vmatpush1.msra.mxu0 %v270
    %309 = vmatprep.subr.mxu0 0.0
    %310 = vmatpush1.msra.mxu0 %v271
    %311 = vmatprep.subr.mxu0 0.0
    %312 = vmatpush1.msra.mxu0 0.0
    %313 = vmatprep.subr.mxu0 0.0
    %314 = vmatpush1.msra.mxu0 0.0
    %315 = vmatprep.subr.mxu0 0.0
    %316 = vmatpush1.msra.mxu0 0.0
    %317 = vmatprep.subr.mxu0 0.0
    %318 = vmatpush1.msra.mxu0 0.0
    %319 = vmatprep.subr.mxu0 0.0
    %320 = vmatpush1.msra.mxu0 0.0
    %321 = vmatprep.subr.mxu0 0.0
    %322 = vmatpush1.msra.mxu0 0.0
    %323 = vmatprep.subr.mxu0 0.0
    %324 = vmatpush1.msra.mxu0 0.0
    %325 = vmatprep.subr.mxu0 0.0
    %326 = vmatpush1.msra.mxu0 0.0
    %327 = vmatprep.subr.mxu0 0.0
    %328 = vmatpush1.msra.mxu0 0.0
    %329 = vmatprep.subr.mxu0 0.0
    %330 = vmatpush1.msra.mxu0 0.0
    %331 = vmatprep.subr.mxu0 0.0
    %332 = vmatpush1.msra.mxu0 0.0
    %333 = vmatprep.subr.mxu0 0.0
    %334 = vmatpush1.msra.mxu0 0.0
    %335 = vmatprep.subr.mxu0 0.0
    %336 = vmatpush1.msra.mxu0 0.0
    %337 = vmatprep.subr.mxu0 0.0
    %338 = vmatpush1.msra.mxu0 0.0
    %339 = vmatprep.subr.mxu0 0.0
    %340 = vmatpush1.msra.mxu0 0.0
    %341 = vmatprep.subr.mxu0 0.0
    %342 = vmatpush1.msra.mxu0 0.0
    %343 = vmatprep.mubr.f32.mxu0 0.0
    %344 = vmatmul.mubr.f32.gmra.mrb[0].mxu0 %v178
    %v345 = vpop.f32.mrb[0].mxu0
    %v346 = vadd.f32 %v277, %v345
    %v347 = vpop.f32.mrb[0].mxu0
    %348 = vmatprep.mubr.f32.mxu0 0.0
    %349 = vmatmul.mubr.f32.gmra.mrb[0].mxu0 %v183
    %v350 = vpop.f32.mrb[0].mxu0
    %v351 = vadd.f32 %v277, %v350
    %v352 = vpop.f32.mrb[0].mxu0
    %353 = vmatprep.mubr.f32.mxu0 0.0
    %354 = vmatmul.mubr.f32.gmra.mrb[0].mxu0 %v188
    %v355 = vpop.f32.mrb[0].mxu0
    %v356 = vadd.f32 %v277, %v355
    %v357 = vpop.f32.mrb[0].mxu0
    %358 = vmatprep.mubr.f32.mxu0 0.0
    %359 = vmatmul.mubr.f32.gmra.mrb[0].mxu0 %v193
    %v360 = vpop.f32.mrb[0].mxu0
    %v361 = vadd.f32 %v277, %v360
    %v362 = vpop.f32.mrb[0].mxu0
    %363 = vmatprep.mubr.f32.mxu0 0.0
    %364 = vmatmul.mubr.f32.gmra.mrb[0].mxu0 %v198
    %v365 = vpop.f32.mrb[0].mxu0
    %v366 = vadd.f32 %v277, %v365
    %v367 = vpop.f32.mrb[0].mxu0
    %368 = vmatprep.mubr.f32.mxu0 0.0
    %369 = vmatmul.mubr.f32.gmra.mrb[0].mxu0 %v203
    %v370 = vpop.f32.mrb[0].mxu0
    %v371 = vadd.f32 %v277, %v370
    %v372 = vpop.f32.mrb[0].mxu0
    %373 = vmatprep.mubr.f32.mxu0 0.0
    %374 = vmatmul.mubr.f32.gmra.mrb[0].mxu0 %v208
    %v375 = vpop.f32.mrb[0].mxu0
    %v376 = vadd.f32 %v277, %v375
    %v377 = vpop.f32.mrb[0].mxu0
    %378 = vmatprep.mubr.f32.mxu0 0.0
    %379 = vmatmul.mubr.f32.gmra.mrb[0].mxu0 %v213
    %v380 = vpop.f32.mrb[0].mxu0
    %v381 = vadd.f32 %v277, %v380
    %v382 = vpop.f32.mrb[0].mxu0
    %383 = vmatprep.mubr.f32.mxu0 0.0
    %384 = vmatmul.mubr.f32.gmra.mrb[0].mxu0 %v218
    %v385 = vpop.f32.mrb[0].mxu0
    %v386 = vadd.f32 %v277, %v385
    %v387 = vpop.f32.mrb[0].mxu0
    %388 = vmatprep.mubr.f32.mxu0 0.0
    %389 = vmatmul.mubr.f32.gmra.mrb[0].mxu0 %v223
    %v390 = vpop.f32.mrb[0].mxu0
    %v391 = vadd.f32 %v277, %v390
    %v392 = vpop.f32.mrb[0].mxu0
    %393 = vmatprep.mubr.f32.mxu0 0.0
    %394 = vmatmul.mubr.f32.gmra.mrb[0].mxu0 %v228
    %v395 = vpop.f32.mrb[0].mxu0
    %v396 = vadd.f32 %v277, %v395
    %v397 = vpop.f32.mrb[0].mxu0
    %398 = vmatprep.mubr.f32.mxu0 0.0
    %399 = vmatmul.mubr.f32.gmra.mrb[0].mxu0 %v233
    %v400 = vpop.f32.mrb[0].mxu0
    %v401 = vadd.f32 %v277, %v400
    %v402 = vpop.f32.mrb[0].mxu0
    %403 = vmatprep.mubr.f32.mxu0 0.0
    %404 = vmatmul.mubr.f32.gmra.mrb[0].mxu0 %v238
    %v405 = vpop.f32.mrb[0].mxu0
    %v406 = vadd.f32 %v277, %v405
    %v407 = vpop.f32.mrb[0].mxu0
    %408 = vmatprep.mubr.f32.mxu0 0.0
    %409 = vmatmul.mubr.f32.gmra.mrb[0].mxu0 %v243
    %v410 = vpop.f32.mrb[0].mxu0
    %v411 = vadd.f32 %v277, %v410
    %v412 = vpop.f32.mrb[0].mxu0
    %413 = vmatprep.mubr.f32.mxu0 0.0
    %414 = vmatmul.mubr.f32.gmra.mrb[0].mxu0 %v248
    %v415 = vpop.f32.mrb[0].mxu0
    %v416 = vadd.f32 %v277, %v415
    %v417 = vpop.f32.mrb[0].mxu0
    %418 = vmatprep.mubr.f32.mxu0 0.0
    %419 = vmatmul.mubr.f32.gmra.mrb[0].mxu0 %v253
    %v420 = vpop.f32.mrb[0].mxu0
    %v421 = vadd.f32 %v277, %v420
    %v422 = vpop.f32.mrb[0].mxu0
    %423 = vdwg.mxu0
    %v424 = vmax.f32 %v346, 0.0
    %v425 = vmax.f32 %v351, 0.0
    %v426 = vmax.f32 %v356, 0.0
    %v427 = vmax.f32 %v361, 0.0
    %v428 = vmax.f32 %v366, 0.0
    %v429 = vmax.f32 %v371, 0.0
    %v430 = vmax.f32 %v376, 0.0
    %v431 = vmax.f32 %v381, 0.0
    %v432 = vmax.f32 %v386, 0.0
    %v433 = vmax.f32 %v391, 0.0
    %v434 = vmax.f32 %v396, 0.0
    %v435 = vmax.f32 %v401, 0.0
    %v436 = vmax.f32 %v406, 0.0
    %v437 = vmax.f32 %v411, 0.0
    %v438 = vmax.f32 %v416, 0.0
    %v439 = vmax.f32 %v421, 0.0
    %440 = vmatprep.subr.mxu0 0.0
    %441 = vmatpush1.msra.mxu0 %v424
    %442 = vmatprep.subr.mxu0 0.0
    %443 = vmatpush1.msra.mxu0 %v425
    %444 = vmatprep.subr.mxu0 0.0
    %445 = vmatpush1.msra.mxu0 %v426
    %446 = vmatprep.subr.mxu0 0.0
    %447 = vmatpush1.msra.mxu0 %v427
    %448 = vmatprep.subr.mxu0 0.0
    %449 = vmatpush1.msra.mxu0 %v428
    %450 = vmatprep.subr.mxu0 0.0
    %451 = vmatpush1.msra.mxu0 %v429
    %452 = vmatprep.subr.mxu0 0.0
    %453 = vmatpush1.msra.mxu0 %v430
    %454 = vmatprep.subr.mxu0 0.0
    %455 = vmatpush1.msra.mxu0 %v431
    %456 = vmatprep.subr.mxu0 0.0
    %457 = vmatpush1.msra.mxu0 %v432
    %458 = vmatprep.subr.mxu0 0.0
    %459 = vmatpush1.msra.mxu0 %v433
    %460 = vmatprep.subr.mxu0 0.0
    %461 = vmatpush1.msra.mxu0 %v434
    %462 = vmatprep.subr.mxu0 0.0
    %463 = vmatpush1.msra.mxu0 %v435
    %464 = vmatprep.subr.mxu0 0.0
    %465 = vmatpush1.msra.mxu0 %v436
    %466 = vmatprep.subr.mxu0 0.0
    %467 = vmatpush1.msra.mxu0 %v437
    %468 = vmatprep.subr.mxu0 0.0
    %469 = vmatpush1.msra.mxu0 %v438
    %470 = vmatprep.subr.mxu0 0.0
    %471 = vmatpush1.msra.mxu0 %v439
    %472 = vmatprep.subr.mxu0 0.0
    %473 = vmatpush1.msra.mxu0 0.0
    %474 = vmatprep.subr.mxu0 0.0
    %475 = vmatpush1.msra.mxu0 0.0
    %476 = vmatprep.subr.mxu0 0.0
    %477 = vmatpush1.msra.mxu0 0.0
    %478 = vmatprep.subr.mxu0 0.0
    %479 = vmatpush1.msra.mxu0 0.0
    %480 = vmatprep.subr.mxu0 0.0
    %481 = vmatpush1.msra.mxu0 0.0
    %482 = vmatprep.subr.mxu0 0.0
    %483 = vmatpush1.msra.mxu0 0.0
    %484 = vmatprep.subr.mxu0 0.0
    %485 = vmatpush1.msra.mxu0 0.0
    %486 = vmatprep.subr.mxu0 0.0
    %487 = vmatpush1.msra.mxu0 0.0
    %488 = vmatprep.subr.mxu0 0.0
    %489 = vmatpush1.msra.mxu0 0.0
    %490 = vmatprep.subr.mxu0 0.0
    %491 = vmatpush1.msra.mxu0 0.0
    %492 = vmatprep.subr.mxu0 0.0
    %493 = vmatpush1.msra.mxu0 0.0
    %494 = vmatprep.subr.mxu0 0.0
    %495 = vmatpush1.msra.mxu0 0.0
    %496 = vmatprep.subr.mxu0 0.0
    %497 = vmatpush1.msra.mxu0 0.0
    %498 = vmatprep.subr.mxu0 0.0
    %499 = vmatpush1.msra.mxu0 0.0
    %500 = vmatprep.subr.mxu0 0.0
    %501 = vmatpush1.msra.mxu0 0.0
    %502 = vmatprep.subr.mxu0 0.0
    %503 = vmatpush1.msra.mxu0 0.0
    %504 = vmatprep.mubr.f32.mxu0 0.0
    %505 = vmatmul.mubr.f32.gmra.mrb[0].mxu0 %v79
    %v506 = vpop.f32.mrb[0].mxu0
    %v507 = vadd.f32 0.0, %v506
    %v508 = vpop.f32.mrb[0].mxu0
    %509 = vmatprep.mubr.f32.mxu0 0.0
    %510 = vmatmul.mubr.f32.gmra.mrb[0].mxu0 %v80
    %v511 = vpop.f32.mrb[0].mxu0
    %v512 = vadd.f32 0.0, %v511
    %v513 = vpop.f32.mrb[0].mxu0
    %514 = vmatprep.mubr.f32.mxu0 0.0
    %515 = vmatmul.mubr.f32.gmra.mrb[0].mxu0 %v81
    %v516 = vpop.f32.mrb[0].mxu0
    %v517 = vadd.f32 0.0, %v516
    %v518 = vpop.f32.mrb[0].mxu0
    %519 = vmatprep.mubr.f32.mxu0 0.0
    %520 = vmatmul.mubr.f32.gmra.mrb[0].mxu0 %v82
    %v521 = vpop.f32.mrb[0].mxu0
    %v522 = vadd.f32 0.0, %v521
    %v523 = vpop.f32.mrb[0].mxu0
    %524 = vmatprep.mubr.f32.mxu0 0.0
    %525 = vmatmul.mubr.f32.gmra.mrb[0].mxu0 %v83
    %v526 = vpop.f32.mrb[0].mxu0
    %v527 = vadd.f32 0.0, %v526
    %v528 = vpop.f32.mrb[0].mxu0
    %529 = vmatprep.mubr.f32.mxu0 0.0
    %530 = vmatmul.mubr.f32.gmra.mrb[0].mxu0 %v84
    %v531 = vpop.f32.mrb[0].mxu0
    %v532 = vadd.f32 0.0, %v531
    %v533 = vpop.f32.mrb[0].mxu0
    %534 = vmatprep.mubr.f32.mxu0 0.0
    %535 = vmatmul.mubr.f32.gmra.mrb[0].mxu0 %v85
    %v536 = vpop.f32.mrb[0].mxu0
    %v537 = vadd.f32 0.0, %v536
    %v538 = vpop.f32.mrb[0].mxu0
    %539 = vmatprep.mubr.f32.mxu0 0.0
    %540 = vmatmul.mubr.f32.gmra.mrb[0].mxu0 %v86
    %v541 = vpop.f32.mrb[0].mxu0
    %v542 = vadd.f32 0.0, %v541
    %v543 = vpop.f32.mrb[0].mxu0
    %544 = vmatprep.mubr.f32.mxu0 0.0
    %545 = vmatmul.mubr.f32.gmra.mrb[0].mxu0 %v87
    %v546 = vpop.f32.mrb[0].mxu0
    %v547 = vadd.f32 0.0, %v546
    %v548 = vpop.f32.mrb[0].mxu0
    %549 = vmatprep.mubr.f32.mxu0 0.0
    %550 = vmatmul.mubr.f32.gmra.mrb[0].mxu0 %v88
    %v551 = vpop.f32.mrb[0].mxu0
    %v552 = vadd.f32 0.0, %v551
    %v553 = vpop.f32.mrb[0].mxu0
    %554 = vmatprep.mubr.f32.mxu0 0.0
    %555 = vmatmul.mubr.f32.gmra.mrb[0].mxu0 %v89
    %v556 = vpop.f32.mrb[0].mxu0
    %v557 = vadd.f32 0.0, %v556
    %v558 = vpop.f32.mrb[0].mxu0
    %559 = vmatprep.mubr.f32.mxu0 0.0
    %560 = vmatmul.mubr.f32.gmra.mrb[0].mxu0 %v90
    %v561 = vpop.f32.mrb[0].mxu0
    %v562 = vadd.f32 0.0, %v561
    %v563 = vpop.f32.mrb[0].mxu0
    %564 = vmatprep.mubr.f32.mxu0 0.0
    %565 = vmatmul.mubr.f32.gmra.mrb[0].mxu0 %v91
    %v566 = vpop.f32.mrb[0].mxu0
    %v567 = vadd.f32 0.0, %v566
    %v568 = vpop.f32.mrb[0].mxu0
    %569 = vmatprep.mubr.f32.mxu0 0.0
    %570 = vmatmul.mubr.f32.gmra.mrb[0].mxu0 %v92
    %v571 = vpop.f32.mrb[0].mxu0
    %v572 = vadd.f32 0.0, %v571
    %v573 = vpop.f32.mrb[0].mxu0
    %574 = vmatprep.mubr.f32.mxu0 0.0
    %575 = vmatmul.mubr.f32.gmra.mrb[0].mxu0 %v93
    %v576 = vpop.f32.mrb[0].mxu0
    %v577 = vadd.f32 0.0, %v576
    %v578 = vpop.f32.mrb[0].mxu0
    %579 = vmatprep.mubr.f32.mxu0 0.0
    %580 = vmatmul.mubr.f32.gmra.mrb[0].mxu0 %v94
    %v581 = vpop.f32.mrb[0].mxu0
    %v582 = vadd.f32 0.0, %v581
    %v583 = vpop.f32.mrb[0].mxu0
    %584 = vdwg.mxu0
    %v585 = vld [vmem:[#allocation8] sm:$0xff]
    %v586 = vld [vmem:[#allocation8 + $0x8] sm:$0xff]
    %v587 = vld [vmem:[#allocation8 + $0x10] sm:$0xff]
    %v588 = vld [vmem:[#allocation8 + $0x18] sm:$0xff]
    %v589 = vld [vmem:[#allocation8 + $0x20] sm:$0xff]
    %v590 = vld [vmem:[#allocation8 + $0x28] sm:$0xff]
    %v591 = vld [vmem:[#allocation8 + $0x30] sm:$0xff]
    %v592 = vld [vmem:[#allocation8 + $0x38] sm:$0xff]
    %v593 = vld [vmem:[#allocation8 + $0x40] sm:$0xff]
    %v594 = vld [vmem:[#allocation8 + $0x48] sm:$0xff]
    %v595 = vld [vmem:[#allocation8 + $0x50] sm:$0xff]
    %v596 = vld [vmem:[#allocation8 + $0x58] sm:$0xff]
    %v597 = vld [vmem:[#allocation8 + $0x60] sm:$0xff]
    %v598 = vld [vmem:[#allocation8 + $0x68] sm:$0xff]
    %v599 = vld [vmem:[#allocation8 + $0x70] sm:$0xff]
    %v600 = vld [vmem:[#allocation8 + $0x78] sm:$0xff]
    %v601 = vld [vmem:[%s5] sm:$0x1]
    %v603 = vlaneseq
    %v604 = vshrl.u32 %v603, 7
    %v605 = vsub.s32 0, %v604
    %v606 = vrot.slane %v601, %v605
    %608 = vmatprep.subr.mxu0 0.0
    %609 = vmatpush1.msra.mxu0 %v585
    %610 = vmatprep.subr.mxu0 0.0
    %611 = vmatpush1.msra.mxu0 %v586
    %612 = vmatprep.subr.mxu0 0.0
    %613 = vmatpush1.msra.mxu0 %v587
    %614 = vmatprep.subr.mxu0 0.0
    %615 = vmatpush1.msra.mxu0 %v588
    %616 = vmatprep.subr.mxu0 0.0
    %617 = vmatpush1.msra.mxu0 %v589
    %618 = vmatprep.subr.mxu0 0.0
    %619 = vmatpush1.msra.mxu0 %v590
    %620 = vmatprep.subr.mxu0 0.0
    %621 = vmatpush1.msra.mxu0 %v591
    %622 = vmatprep.subr.mxu0 0.0
    %623 = vmatpush1.msra.mxu0 %v592
    %624 = vmatprep.subr.mxu0 0.0
    %625 = vmatpush1.msra.mxu0 %v593
    %626 = vmatprep.subr.mxu0 0.0
    %627 = vmatpush1.msra.mxu0 %v594
    %628 = vmatprep.subr.mxu0 0.0
    %629 = vmatpush1.msra.mxu0 %v595
    %630 = vmatprep.subr.mxu0 0.0
    %631 = vmatpush1.msra.mxu0 %v596
    %632 = vmatprep.subr.mxu0 0.0
    %633 = vmatpush1.msra.mxu0 %v597
    %634 = vmatprep.subr.mxu0 0.0
    %635 = vmatpush1.msra.mxu0 %v598
    %636 = vmatprep.subr.mxu0 0.0
    %637 = vmatpush1.msra.mxu0 %v599
    %638 = vmatprep.subr.mxu0 0.0
    %639 = vmatpush1.msra.mxu0 %v600
    %640 = vmatprep.subr.mxu0 0.0
    %641 = vmatpush1.msra.mxu0 0.0
    %642 = vmatprep.subr.mxu0 0.0
    %643 = vmatpush1.msra.mxu0 0.0
    %644 = vmatprep.subr.mxu0 0.0
    %645 = vmatpush1.msra.mxu0 0.0
    %646 = vmatprep.subr.mxu0 0.0
    %647 = vmatpush1.msra.mxu0 0.0
    %648 = vmatprep.subr.mxu0 0.0
    %649 = vmatpush1.msra.mxu0 0.0
    %650 = vmatprep.subr.mxu0 0.0
    %651 = vmatpush1.msra.mxu0 0.0
    %652 = vmatprep.subr.mxu0 0.0
    %653 = vmatpush1.msra.mxu0 0.0
    %654 = vmatprep.subr.mxu0 0.0
    %655 = vmatpush1.msra.mxu0 0.0
    %656 = vmatprep.subr.mxu0 0.0
    %657 = vmatpush1.msra.mxu0 0.0
    %658 = vmatprep.subr.mxu0 0.0
    %659 = vmatpush1.msra.mxu0 0.0
    %660 = vmatprep.subr.mxu0 0.0
    %661 = vmatpush1.msra.mxu0 0.0
    %662 = vmatprep.subr.mxu0 0.0
    %663 = vmatpush1.msra.mxu0 0.0
    %664 = vmatprep.subr.mxu0 0.0
    %665 = vmatpush1.msra.mxu0 0.0
    %666 = vmatprep.subr.mxu0 0.0
    %667 = vmatpush1.msra.mxu0 0.0
    %668 = vmatprep.subr.mxu0 0.0
    %669 = vmatpush1.msra.mxu0 0.0
    %670 = vmatprep.subr.mxu0 0.0
    %671 = vmatpush1.msra.mxu0 0.0
    %672 = vmatprep.mubr.f32.mxu0 0.0
    %673 = vmatmul.mubr.f32.gmra.mrb[0].mxu0 %v507
    %v674 = vpop.f32.mrb[0].mxu0
    %v675 = vadd.f32 %v606, %v674
    %v676 = vpop.f32.mrb[0].mxu0
    %677 = vmatprep.mubr.f32.mxu0 0.0
    %678 = vmatmul.mubr.f32.gmra.mrb[0].mxu0 %v512
    %v679 = vpop.f32.mrb[0].mxu0
    %v680 = vadd.f32 %v606, %v679
    %v681 = vpop.f32.mrb[0].mxu0
    %682 = vmatprep.mubr.f32.mxu0 0.0
    %683 = vmatmul.mubr.f32.gmra.mrb[0].mxu0 %v517
    %v684 = vpop.f32.mrb[0].mxu0
    %v685 = vadd.f32 %v606, %v684
    %v686 = vpop.f32.mrb[0].mxu0
    %687 = vmatprep.mubr.f32.mxu0 0.0
    %688 = vmatmul.mubr.f32.gmra.mrb[0].mxu0 %v522
    %v689 = vpop.f32.mrb[0].mxu0
    %v690 = vadd.f32 %v606, %v689
    %v691 = vpop.f32.mrb[0].mxu0
    %692 = vmatprep.mubr.f32.mxu0 0.0
    %693 = vmatmul.mubr.f32.gmra.mrb[0].mxu0 %v527
    %v694 = vpop.f32.mrb[0].mxu0
    %v695 = vadd.f32 %v606, %v694
    %v696 = vpop.f32.mrb[0].mxu0
    %697 = vmatprep.mubr.f32.mxu0 0.0
    %698 = vmatmul.mubr.f32.gmra.mrb[0].mxu0 %v532
    %v699 = vpop.f32.mrb[0].mxu0
    %v700 = vadd.f32 %v606, %v699
    %v701 = vpop.f32.mrb[0].mxu0
    %702 = vmatprep.mubr.f32.mxu0 0.0
    %703 = vmatmul.mubr.f32.gmra.mrb[0].mxu0 %v537
    %v704 = vpop.f32.mrb[0].mxu0
    %v705 = vadd.f32 %v606, %v704
    %v706 = vpop.f32.mrb[0].mxu0
    %707 = vmatprep.mubr.f32.mxu0 0.0
    %708 = vmatmul.mubr.f32.gmra.mrb[0].mxu0 %v542
    %v709 = vpop.f32.mrb[0].mxu0
    %v710 = vadd.f32 %v606, %v709
    %v711 = vpop.f32.mrb[0].mxu0
    %712 = vmatprep.mubr.f32.mxu0 0.0
    %713 = vmatmul.mubr.f32.gmra.mrb[0].mxu0 %v547
    %v714 = vpop.f32.mrb[0].mxu0
    %v715 = vadd.f32 %v606, %v714
    %v716 = vpop.f32.mrb[0].mxu0
    %717 = vmatprep.mubr.f32.mxu0 0.0
    %718 = vmatmul.mubr.f32.gmra.mrb[0].mxu0 %v552
    %v719 = vpop.f32.mrb[0].mxu0
    %v720 = vadd.f32 %v606, %v719
    %v721 = vpop.f32.mrb[0].mxu0
    %722 = vmatprep.mubr.f32.mxu0 0.0
    %723 = vmatmul.mubr.f32.gmra.mrb[0].mxu0 %v557
    %v724 = vpop.f32.mrb[0].mxu0
    %v725 = vadd.f32 %v606, %v724
    %v726 = vpop.f32.mrb[0].mxu0
    %727 = vmatprep.mubr.f32.mxu0 0.0
    %728 = vmatmul.mubr.f32.gmra.mrb[0].mxu0 %v562
    %v729 = vpop.f32.mrb[0].mxu0
    %v730 = vadd.f32 %v606, %v729
    %v731 = vpop.f32.mrb[0].mxu0
    %732 = vmatprep.mubr.f32.mxu0 0.0
    %733 = vmatmul.mubr.f32.gmra.mrb[0].mxu0 %v567
    %v734 = vpop.f32.mrb[0].mxu0
    %v735 = vadd.f32 %v606, %v734
    %v736 = vpop.f32.mrb[0].mxu0
    %737 = vmatprep.mubr.f32.mxu0 0.0
    %738 = vmatmul.mubr.f32.gmra.mrb[0].mxu0 %v572
    %v739 = vpop.f32.mrb[0].mxu0
    %v740 = vadd.f32 %v606, %v739
    %v741 = vpop.f32.mrb[0].mxu0
    %742 = vmatprep.mubr.f32.mxu0 0.0
    %743 = vmatmul.mubr.f32.gmra.mrb[0].mxu0 %v577
    %v744 = vpop.f32.mrb[0].mxu0
    %v745 = vadd.f32 %v606, %v744
    %v746 = vpop.f32.mrb[0].mxu0
    %747 = vmatprep.mubr.f32.mxu0 0.0
    %748 = vmatmul.mubr.f32.gmra.mrb[0].mxu0 %v582
    %v749 = vpop.f32.mrb[0].mxu0
    %v750 = vadd.f32 %v606, %v749
    %v751 = vpop.f32.mrb[0].mxu0
    %752 = vdwg.mxu0
    %753 = vst [vmem:[#allocation10] sm:$0xff] %v675
    %754 = vst [vmem:[#allocation10 + $0x8] sm:$0xff] %v680
    %755 = vst [vmem:[#allocation10 + $0x10] sm:$0xff] %v685
    %756 = vst [vmem:[#allocation10 + $0x18] sm:$0xff] %v690
    %757 = vst [vmem:[#allocation10 + $0x20] sm:$0xff] %v695
    %758 = vst [vmem:[#allocation10 + $0x28] sm:$0xff] %v700
    %759 = vst [vmem:[#allocation10 + $0x30] sm:$0xff] %v705
    %760 = vst [vmem:[#allocation10 + $0x38] sm:$0xff] %v710
    %761 = vst [vmem:[#allocation10 + $0x40] sm:$0xff] %v715
    %762 = vst [vmem:[#allocation10 + $0x48] sm:$0xff] %v720
    %763 = vst [vmem:[#allocation10 + $0x50] sm:$0xff] %v725
    %764 = vst [vmem:[#allocation10 + $0x58] sm:$0xff] %v730
    %765 = vst [vmem:[#allocation10 + $0x60] sm:$0xff] %v735
    %766 = vst [vmem:[#allocation10 + $0x68] sm:$0xff] %v740
    %767 = vst [vmem:[#allocation10 + $0x70] sm:$0xff] %v745
    %768 = vst [vmem:[#allocation10 + $0x78] sm:$0xff] %v750
    // Predicated region
    $region42: #{tpu_custom_call.1} parent=1 // pred_check
      _
    $region43: #{tpu_custom_call.1} parent=1 // pred_check_branch
      %770 = sbr.rel (0) target = $region45
    $region44: #{tpu_custom_call.1} parent=1 // pred_region
      %s772 = ssub.s32 2048, 2048
      %773 = vsyncadd [#allocation4], %s772
      %s774 = sshll.u32 [#allocation10], 4
      %s775 = int_to_ptr.vmem [resolvable:$true] %s774
      %780 = dma.vmem_to_hbm [thread:$0]  %s775, 2048, %s6, [#allocation4], 128, 128, 8
    $region45: #{tpu_custom_call.1} parent=1 // pred_fallthru
      _
    // Predicated region
    $region46: #{tpu_custom_call.1} parent=1 // pred_check
      _
    $region47: #{tpu_custom_call.1} parent=1 // pred_check_branch
      %782 = sbr.rel (0) target = $region49
    $region48: #{tpu_custom_call.1} parent=1 // pred_region
      %783 = dma.done [#allocation4], 2048
    $region49: #{tpu_custom_call.1} parent=1 // pred_fallthru
      _
    %784 = vsyncpa [#allocation3], 1
    %785 = vsyncpa [#allocation6], 1
    %786 = vsyncpa [#allocation9], 1
    %787 = vsyncpa [#allocation4], 1

</llo_original>
